<compile_context>
chip_gen: v5e
topology: v5e:2x2
jax: 0.10.0
libtpu: 0.0.40
codegen_flags: <defaults>
</compile_context>

<pallas_src>
import functools
import math

import jax
import jax.numpy as jnp
from jax.experimental import pallas as pl
from jax.experimental.pallas import tpu as pltpu


def _dense_kernel(x_ref, w_ref, b_ref, o_ref, acc_ref, *, apply_sigmoid, tf,
                  w_resident):
    """One (TB, TF) tile of the flattened-input matvec.

    x_ref:   (TB, TF)      activation tile               (VMEM, streamed)
    w_ref:   (1, F_pad) or (1, TF) weight                (VMEM, resident/streamed)
    b_ref:   (1,)          bias scalar                   (SMEM)
    o_ref:   (TB, 1)       output tile                   (VMEM, resident over k)
    acc_ref: (TB, 128)     lane-dense f32 accumulator    (VMEM scratch)
    """
    k = pl.program_id(1)

    @pl.when(k == 0)
    def _():
        acc_ref[...] = jnp.zeros_like(acc_ref)

    # Per-step: fold the TF/128 lane columns of (x * w) into the lane-dense
    # accumulator with pure VPU multiply-adds.  No cross-lane reduce and no
    # lane-sparse store in the hot loop; everything hides under the x DMA.
    n_cols = tf // 128
    acc = acc_ref[...]
    for c in range(n_cols):
        x_c = x_ref[:, pl.ds(c * 128, 128)].astype(jnp.float32)
        if w_resident:
            start = pl.multiple_of(k * tf + c * 128, 128)
            w_c = w_ref[:, pl.ds(start, 128)].astype(jnp.float32)
        else:
            w_c = w_ref[:, pl.ds(c * 128, 128)].astype(jnp.float32)
        acc = acc + x_c * w_c
    acc_ref[...] = acc

    @pl.when(k == pl.num_programs(1) - 1)
    def _():
        # Single XLU cross-lane reduce per row-tile, then bias + sigmoid.
        total = jnp.sum(acc_ref[...], axis=-1, keepdims=True)   # (TB, 1)
        out = total + b_ref[0]
        if apply_sigmoid:
            out = jax.nn.sigmoid(out)
        o_ref[...] = out.astype(o_ref.dtype)


def _pick_tile(dim, candidates):
    """Largest candidate that evenly divides `dim`; else the full dim."""
    for c in candidates:
        if c <= dim and dim % c == 0:
            return c
    return dim


def dense_forward(x, weight, bias, *, apply_sigmoid=True,
                  max_resident_w_bytes=4 * 1024 * 1024):
    """Pallas forward for `Dense`: sigmoid(Flatten(x) @ W^T + b).

    x:      (B, ...) float32/bfloat16 (any trailing shape; flattened to (B, F))
    weight: (1, F)   as stored by torch.nn.Linear(F, 1)
    bias:   (1,)
    returns (B, 1), matching nn.Linear(F, 1) (+ optional Sigmoid).
    """
    B = x.shape[0]
    F = math.prod(x.shape[1:])            # pure Python, no device sync
    x_flat = x.reshape(B, F)              # Flatten (glue, plain JAX)
    w = weight.reshape(1, F)              # lane-dense weight
    b = bias.reshape(1)
    out_dtype = x.dtype

    # Zero-pad the feature axis to a multiple of 128 (exact for a dot product)
    # so every BlockSpec stays (8,128)-friendly and never falls back to an
    # oversized full-dim block.
    F_pad = ((F + 127) // 128) * 128
    if F_pad != F:
        x_flat = jnp.pad(x_flat, ((0, 0), (0, F_pad - F)))
        w = jnp.pad(w, ((0, 0), (0, F_pad - F)))

    # ---- tile selection (VMEM-aware, ~8 MiB x blocks) -----------------------
    tb_candidates = (512, 256, 128, 64, 32, 16, 8)
    if B >= 16:
        # Guarantee >= 2 blocks on the parallel B axis so v7x's 2nd TC is used.
        tb_candidates = tuple(c for c in tb_candidates if c <= B // 2)
    TB = _pick_tile(B, tb_candidates)

    x_itemsize = x_flat.dtype.itemsize
    X_BLOCK_BYTES = 8 * 1024 * 1024       # per-buffer target (x2 double-buffered)
    max_tf = max(128, (X_BLOCK_BYTES // (TB * x_itemsize)) // 128 * 128)
    tf_candidates = tuple(c for c in (4096, 2048, 1024, 512, 256, 128)
                          if c <= max_tf)
    TF = _pick_tile(F_pad, tf_candidates)  # 128 always divides F_pad

    grid = (B // TB, F_pad // TF)

    # Keep the whole weight resident in VMEM when it is small enough;
    # otherwise stream it as (1, TF) tiles.
    w_bytes = F_pad * w.dtype.itemsize
    w_resident = w_bytes <= max_resident_w_bytes
    if w_resident:
        w_spec = pl.BlockSpec((1, F_pad), lambda i, k: (0, 0))   # fetched once
    else:
        w_spec = pl.BlockSpec((1, TF), lambda i, k: (0, k))      # streamed

    kernel = functools.partial(_dense_kernel, apply_sigmoid=apply_sigmoid,
                               tf=TF, w_resident=w_resident)

    cost = pl.CostEstimate(
        flops=2 * B * F_pad,
        transcendentals=B if apply_sigmoid else 0,
        bytes_accessed=(B * F_pad * x_itemsize + w_bytes
                        + B * jnp.dtype(out_dtype).itemsize),
    )

    out = pl.pallas_call(
        kernel,
        out_shape=jax.ShapeDtypeStruct((B, 1), out_dtype),
        grid_spec=pltpu.PrefetchScalarGridSpec(
            num_scalar_prefetch=0,
            grid=grid,
            in_specs=[
                pl.BlockSpec((TB, TF), lambda i, k: (i, k)),        # x tile
                w_spec,                                             # weight
                pl.BlockSpec(memory_space=pltpu.MemorySpace.SMEM),  # bias
            ],
            out_specs=pl.BlockSpec((TB, 1), lambda i, k: (i, 0)),
            scratch_shapes=[pltpu.VMEM((TB, 128), jnp.float32)],
        ),
        compiler_params=pltpu.CompilerParams(
            dimension_semantics=("parallel", "arbitrary"),
            vmem_limit_bytes=48 * 1024 * 1024,
        ),
        cost_estimate=cost,
    )(x_flat, w, b)
    return out


if __name__ == "__main__":
    # Shapes consistent with the module: args.input_shape = (4, 16, 16).
    B, C, H, W = 2, 4, 16, 16
    F = C * H * W

    key = jax.random.PRNGKey(0)
    kx, kw, kb = jax.random.split(key, 3)

    x = jax.random.normal(kx, (B, C, H, W), dtype=jnp.float32)
    bound = 1.0 / math.sqrt(F)
    weight = jax.random.uniform(kw, (1, F), minval=-bound, maxval=bound,
                                dtype=jnp.float32)
    bias = jax.random.uniform(kb, (1,), minval=-bound, maxval=bound,
                              dtype=jnp.float32)

    out = dense_forward(x, weight, bias, apply_sigmoid=True)
    out = jax.block_until_ready(out)
    ref = jax.nn.sigmoid(x.reshape(B, F) @ weight.reshape(F, 1) + bias)
    assert out.shape == (B, 1)
    assert jnp.allclose(out, ref, atol=1e-5, rtol=1e-5)

    # Multi-step reduction (grid k > 1) with the resident-weight path.
    B2, C2, H2, W2 = 8, 8, 32, 32          # F2 = 8192 -> 2 reduction steps
    F2 = C2 * H2 * W2
    kx2, kw2, kb2 = jax.random.split(jax.random.PRNGKey(1), 3)
    x2 = jax.random.normal(kx2, (B2, C2, H2, W2), dtype=jnp.float32)
    bound2 = 1.0 / math.sqrt(F2)
    w2 = jax.random.uniform(kw2, (1, F2), minval=-bound2, maxval=bound2,
                            dtype=jnp.float32)
    b2 = jax.random.uniform(kb2, (1,), minval=-bound2, maxval=bound2,
                            dtype=jnp.float32)
    out2 = jax.block_until_ready(dense_forward(x2, w2, b2, apply_sigmoid=True))
    ref2 = jax.nn.sigmoid(x2.reshape(B2, F2) @ w2.reshape(F2, 1) + b2)
    assert out2.shape == (B2, 1)
    assert jnp.allclose(out2, ref2, atol=1e-5, rtol=1e-5)

    # Non-128-divisible feature count (zero-padding path) + streamed weight.
    B3, C3, H3, W3 = 4, 3, 10, 10          # F3 = 300 -> pad to 384, 3 k steps
    F3 = C3 * H3 * W3
    kx3, kw3, kb3 = jax.random.split(jax.random.PRNGKey(2), 3)
    x3 = jax.random.normal(kx3, (B3, C3, H3, W3), dtype=jnp.float32)
    bound3 = 1.0 / math.sqrt(F3)
    w3 = jax.random.uniform(kw3, (1, F3), minval=-bound3, maxval=bound3,
                            dtype=jnp.float32)
    b3 = jax.random.uniform(kb3, (1,), minval=-bound3, maxval=bound3,
                            dtype=jnp.float32)
    out3 = jax.block_until_ready(
        dense_forward(x3, w3, b3, apply_sigmoid=True, max_resident_w_bytes=0))
    ref3 = jax.nn.sigmoid(x3.reshape(B3, F3) @ w3.reshape(F3, 1) + b3)
    assert out3.shape == (B3, 1)
    assert jnp.allclose(out3, ref3, atol=1e-5, rtol=1e-5)

    print("KERNEL_OK")
</pallas_src>

<mosaic_0001>
module attributes {stable_mosaic.version = 11 : i64} {
  func.func @_dense_kernel(%arg0: i32, %arg1: i32, %arg2: memref<2x1024xf32, #tpu.memory_space<vmem>>, %arg3: memref<1x1024xf32, #tpu.memory_space<vmem>>, %arg4: memref<1xf32, #tpu.memory_space<smem>>, %arg5: memref<2x1xf32, #tpu.memory_space<vmem>>, %arg6: memref<2x128xf32, #tpu.memory_space<vmem>>) attributes {dimension_semantics = [#tpu.dimension_semantics<parallel>, #tpu.dimension_semantics<arbitrary>], iteration_bounds = array<i64: 1, 1>, scalar_prefetch = 0 : i64, scratch_operands = 1 : i64, tpu.core_type = #tpu.core_type<tc>, window_params = [{transform_indices = @transform_0, window_bounds = array<i64: 2, 1024>}, {pipeline_mode = #tpu.pipeline_mode<synchronous>, transform_indices = @transform_1, window_bounds = array<i64: 1, 1024>}, {transform_indices = @transform_2, window_bounds = array<i64: 1>}, {transform_indices = @transform_3, window_bounds = array<i64: 2, 1>}]} {
    %c0_i32 = arith.constant 0 : i32
    %0 = arith.cmpi eq, %arg1, %c0_i32 : i32
    %1 = arith.extui %0 : i1 to i32
    %c0_i32_0 = arith.constant 0 : i32
    %2 = arith.cmpi ne, %1, %c0_i32_0 : i32
    scf.if %2 {
      %cst = arith.constant 0.000000e+00 : f32
      %80 = vector.broadcast %cst : f32 to vector<2x128xf32>
      %c0_31 = arith.constant 0 : index
      %c0_32 = arith.constant 0 : index
      %81 = vector.load %arg6[%c0_31, %c0_32] : memref<2x128xf32, #tpu.memory_space<vmem>>, vector<2x128xf32>
      tpu.vector_store %arg6[%c0_31, %c0_32], %80 {strides = array<i32>} : memref<2x128xf32, #tpu.memory_space<vmem>>, vector<2x128xf32>,
    } else {
    }
    %c0 = arith.constant 0 : index
    %c0_1 = arith.constant 0 : index
    %3 = vector.load %arg6[%c0, %c0_1] : memref<2x128xf32, #tpu.memory_space<vmem>>, vector<2x128xf32>
    %c0_2 = arith.constant 0 : index
    %c0_3 = arith.constant 0 : index
    %4 = vector.load %arg2[%c0_2, %c0_3] : memref<2x1024xf32, #tpu.memory_space<vmem>>, vector<2x128xf32>
    %c1024_i32 = arith.constant 1024 : i32
    %5 = arith.muli %arg1, %c1024_i32 : i32
    %c0_i32_4 = arith.constant 0 : i32
    %6 = arith.addi %5, %c0_i32_4 : i32
    %7 = tpu.assume_multiple %6, 128 : i32
    %c0_5 = arith.constant 0 : index
    %8 = arith.index_cast %7 : i32 to index
    %9 = vector.load %arg3[%c0_5, %8] : memref<1x1024xf32, #tpu.memory_space<vmem>>, vector<1x128xf32>
    %10 = vector.broadcast %9 : vector<1x128xf32> to vector<2x128xf32>
    %11 = arith.mulf %4, %10 : vector<2x128xf32>
    %12 = arith.addf %3, %11 : vector<2x128xf32>
    %c0_6 = arith.constant 0 : index
    %c128 = arith.constant 128 : index
    %13 = vector.load %arg2[%c0_6, %c128] : memref<2x1024xf32, #tpu.memory_space<vmem>>, vector<2x128xf32>
    %c1024_i32_7 = arith.constant 1024 : i32
    %14 = arith.muli %arg1, %c1024_i32_7 : i32
    %c128_i32 = arith.constant 128 : i32
    %15 = arith.addi %14, %c128_i32 : i32
    %16 = tpu.assume_multiple %15, 128 : i32
    %c0_8 = arith.constant 0 : index
    %17 = arith.index_cast %16 : i32 to index
    %18 = vector.load %arg3[%c0_8, %17] : memref<1x1024xf32, #tpu.memory_space<vmem>>, vector<1x128xf32>
    %19 = vector.broadcast %18 : vector<1x128xf32> to vector<2x128xf32>
    %20 = arith.mulf %13, %19 : vector<2x128xf32>
    %21 = arith.addf %12, %20 : vector<2x128xf32>
    %c0_9 = arith.constant 0 : index
    %c256 = arith.constant 256 : index
    %22 = vector.load %arg2[%c0_9, %c256] : memref<2x1024xf32, #tpu.memory_space<vmem>>, vector<2x128xf32>
    %c1024_i32_10 = arith.constant 1024 : i32
    %23 = arith.muli %arg1, %c1024_i32_10 : i32
    %c256_i32 = arith.constant 256 : i32
    %24 = arith.addi %23, %c256_i32 : i32
    %25 = tpu.assume_multiple %24, 128 : i32
    %c0_11 = arith.constant 0 : index
    %26 = arith.index_cast %25 : i32 to index
    %27 = vector.load %arg3[%c0_11, %26] : memref<1x1024xf32, #tpu.memory_space<vmem>>, vector<1x128xf32>
    %28 = vector.broadcast %27 : vector<1x128xf32> to vector<2x128xf32>
    %29 = arith.mulf %22, %28 : vector<2x128xf32>
    %30 = arith.addf %21, %29 : vector<2x128xf32>
    %c0_12 = arith.constant 0 : index
    %c384 = arith.constant 384 : index
    %31 = vector.load %arg2[%c0_12, %c384] : memref<2x1024xf32, #tpu.memory_space<vmem>>, vector<2x128xf32>
    %c1024_i32_13 = arith.constant 1024 : i32
    %32 = arith.muli %arg1, %c1024_i32_13 : i32
    %c384_i32 = arith.constant 384 : i32
    %33 = arith.addi %32, %c384_i32 : i32
    %34 = tpu.assume_multiple %33, 128 : i32
    %c0_14 = arith.constant 0 : index
    %35 = arith.index_cast %34 : i32 to index
    %36 = vector.load %arg3[%c0_14, %35] : memref<1x1024xf32, #tpu.memory_space<vmem>>, vector<1x128xf32>
    %37 = vector.broadcast %36 : vector<1x128xf32> to vector<2x128xf32>
    %38 = arith.mulf %31, %37 : vector<2x128xf32>
    %39 = arith.addf %30, %38 : vector<2x128xf32>
    %c0_15 = arith.constant 0 : index
    %c512 = arith.constant 512 : index
    %40 = vector.load %arg2[%c0_15, %c512] : memref<2x1024xf32, #tpu.memory_space<vmem>>, vector<2x128xf32>
    %c1024_i32_16 = arith.constant 1024 : i32
    %41 = arith.muli %arg1, %c1024_i32_16 : i32
    %c512_i32 = arith.constant 512 : i32
    %42 = arith.addi %41, %c512_i32 : i32
    %43 = tpu.assume_multiple %42, 128 : i32
    %c0_17 = arith.constant 0 : index
    %44 = arith.index_cast %43 : i32 to index
    %45 = vector.load %arg3[%c0_17, %44] : memref<1x1024xf32, #tpu.memory_space<vmem>>, vector<1x128xf32>
    %46 = vector.broadcast %45 : vector<1x128xf32> to vector<2x128xf32>
    %47 = arith.mulf %40, %46 : vector<2x128xf32>
    %48 = arith.addf %39, %47 : vector<2x128xf32>
    %c0_18 = arith.constant 0 : index
    %c640 = arith.constant 640 : index
    %49 = vector.load %arg2[%c0_18, %c640] : memref<2x1024xf32, #tpu.memory_space<vmem>>, vector<2x128xf32>
    %c1024_i32_19 = arith.constant 1024 : i32
    %50 = arith.muli %arg1, %c1024_i32_19 : i32
    %c640_i32 = arith.constant 640 : i32
    %51 = arith.addi %50, %c640_i32 : i32
    %52 = tpu.assume_multiple %51, 128 : i32
    %c0_20 = arith.constant 0 : index
    %53 = arith.index_cast %52 : i32 to index
    %54 = vector.load %arg3[%c0_20, %53] : memref<1x1024xf32, #tpu.memory_space<vmem>>, vector<1x128xf32>
    %55 = vector.broadcast %54 : vector<1x128xf32> to vector<2x128xf32>
    %56 = arith.mulf %49, %55 : vector<2x128xf32>
    %57 = arith.addf %48, %56 : vector<2x128xf32>
    %c0_21 = arith.constant 0 : index
    %c768 = arith.constant 768 : index
    %58 = vector.load %arg2[%c0_21, %c768] : memref<2x1024xf32, #tpu.memory_space<vmem>>, vector<2x128xf32>
    %c1024_i32_22 = arith.constant 1024 : i32
    %59 = arith.muli %arg1, %c1024_i32_22 : i32
    %c768_i32 = arith.constant 768 : i32
    %60 = arith.addi %59, %c768_i32 : i32
    %61 = tpu.assume_multiple %60, 128 : i32
    %c0_23 = arith.constant 0 : index
    %62 = arith.index_cast %61 : i32 to index
    %63 = vector.load %arg3[%c0_23, %62] : memref<1x1024xf32, #tpu.memory_space<vmem>>, vector<1x128xf32>
    %64 = vector.broadcast %63 : vector<1x128xf32> to vector<2x128xf32>
    %65 = arith.mulf %58, %64 : vector<2x128xf32>
    %66 = arith.addf %57, %65 : vector<2x128xf32>
    %c0_24 = arith.constant 0 : index
    %c896 = arith.constant 896 : index
    %67 = vector.load %arg2[%c0_24, %c896] : memref<2x1024xf32, #tpu.memory_space<vmem>>, vector<2x128xf32>
    %c1024_i32_25 = arith.constant 1024 : i32
    %68 = arith.muli %arg1, %c1024_i32_25 : i32
    %c896_i32 = arith.constant 896 : i32
    %69 = arith.addi %68, %c896_i32 : i32
    %70 = tpu.assume_multiple %69, 128 : i32
    %c0_26 = arith.constant 0 : index
    %71 = arith.index_cast %70 : i32 to index
    %72 = vector.load %arg3[%c0_26, %71] : memref<1x1024xf32, #tpu.memory_space<vmem>>, vector<1x128xf32>
    %73 = vector.broadcast %72 : vector<1x128xf32> to vector<2x128xf32>
    %74 = arith.mulf %67, %73 : vector<2x128xf32>
    %75 = arith.addf %66, %74 : vector<2x128xf32>
    %c0_27 = arith.constant 0 : index
    %c0_28 = arith.constant 0 : index
    %76 = vector.load %arg6[%c0_27, %c0_28] : memref<2x128xf32, #tpu.memory_space<vmem>>, vector<2x128xf32>
    tpu.vector_store %arg6[%c0_27, %c0_28], %75 {strides = array<i32>} : memref<2x128xf32, #tpu.memory_space<vmem>>, vector<2x128xf32>,
    %c0_i32_29 = arith.constant 0 : i32
    %77 = arith.cmpi eq, %arg1, %c0_i32_29 : i32
    %78 = arith.extui %77 : i1 to i32
    %c0_i32_30 = arith.constant 0 : i32
    %79 = arith.cmpi ne, %78, %c0_i32_30 : i32
    scf.if %79 {
      %c0_31 = arith.constant 0 : index
      %c0_32 = arith.constant 0 : index
      %80 = vector.load %arg6[%c0_31, %c0_32] : memref<2x128xf32, #tpu.memory_space<vmem>>, vector<2x128xf32>
      %cst = arith.constant dense<0.000000e+00> : vector<2xf32>
      %81 = vector.multi_reduction <add>, %80, %cst [1] : vector<2x128xf32> to vector<2xf32>
      %82 = vector.shape_cast %81 : vector<2xf32> to vector<2x1xf32>
      %c0_33 = arith.constant 0 : index
      %83 = memref.load %arg4[%c0_33] : memref<1xf32, #tpu.memory_space<smem>>
      %84 = vector.broadcast %83 : f32 to vector<2x1xf32>
      %85 = arith.addf %82, %84 : vector<2x1xf32>
      %86 = arith.negf %85 : vector<2x1xf32>
      %87 = math.exp %86 : vector<2x1xf32>
      %cst_34 = arith.constant 1.000000e+00 : f32
      %88 = vector.broadcast %cst_34 : f32 to vector<2x1xf32>
      %89 = arith.addf %88, %87 : vector<2x1xf32>
      %90 = arith.divf %88, %89 : vector<2x1xf32>
      %c0_35 = arith.constant 0 : index
      %c0_36 = arith.constant 0 : index
      %91 = vector.load %arg5[%c0_35, %c0_36] : memref<2x1xf32, #tpu.memory_space<vmem>>, vector<2x1xf32>
      tpu.vector_store %arg5[%c0_35, %c0_36], %90 {strides = array<i32>} : memref<2x1xf32, #tpu.memory_space<vmem>>, vector<2x1xf32>,
    } else {
    }
    return
  }
  func.func @transform_0(%arg0: i32, %arg1: i32) -> (i32, i32) {
    %c0_i32 = arith.constant 0 : i32
    return %arg0, %arg1 : i32, i32
  }
  func.func @transform_1(%arg0: i32, %arg1: i32) -> (i32, i32) {
    %c0_i32 = arith.constant 0 : i32
    %c0_i32_0 = arith.constant 0 : i32
    %c0_i32_1 = arith.constant 0 : i32
    return %c0_i32, %c0_i32_0 : i32, i32
  }
  func.func @transform_2(%arg0: i32, %arg1: i32) -> i32 {
    %c0_i32 = arith.constant 0 : i32
    %c0_i32_0 = arith.constant 0 : i32
    return %c0_i32 : i32
  }
  func.func @transform_3(%arg0: i32, %arg1: i32) -> (i32, i32) {
    %c0_i32 = arith.constant 0 : i32
    %c0_i32_0 = arith.constant 0 : i32
    return %arg0, %c0_i32 : i32, i32
  }
}

</mosaic_0001>

<llo_original>
// kernel: tpu_custom_call.1
$region0: #{tpu_custom_call.1}
  #allocation0 [shape = 'u32[]', space=smem, size = 0x4, offset = 0x4, fixed_abs, tag = 'smem constant byte address 0x4 - core index']
  #allocation1 [shape = 'u32[72,128]{1,0:T(1,128)}', space=vmem, size = 0x9000, scoped, tag = 'internal scratch']
  #allocation2 [shape = 'f32[2,128]{1,0:T(2,128)}', space=vmem, size = 0x400, scoped, tag = 'scratch operand']
  #allocation3 [shape = 'f32[1]{0:T(128)S(6)}', space=smem, size = 0x200, scoped, tag = 'scoped memory for tpu_custom_call.1']
  %s0 = inlined_call_operand.hbm [shape: f32[2,1024], index: 0, kind: input, shape index: {}]
  %s1 = inlined_call_operand.hbm [shape: f32[1,1024], index: 1, kind: input, shape index: {}]
  %s2 = inlined_call_operand.<no memory space> [shape: f32[1], index: 2, kind: input, shape index: {}]
  %s3 = inlined_call_operand.vmem [shape: f32[2,1], index: 3, kind: output, shape index: {}]
  %s4 = sld [smem:[#allocation0]]
  $region38: #{tpu_custom_call.1} parent=0
    _
  %s6 = ssub.s32 1, %s4
  %s7 = scalar_select 0, %s6, %s4
  %8 = sst [smem:[#allocation3]] %s2
  $region1: #{tpu_custom_call.1} parent=0
    #allocation4 [shape = 'u8[8192]{0}', space=vmem, size = 0x2000, scoped, tag = 'input window, operand 0, single buffered']
    #allocation5 [shape = 's32[1]{0}', space=sflag, size = 0x4, scoped, tag = 'scoped memory for tpu_custom_call.1']
    #allocation6 [shape = 'u8[4096]{0}', space=vmem, size = 0x1000, scoped, tag = 'input window, operand 1, single buffered']
    #allocation7 [shape = 's32[1]{0}', space=sflag, size = 0x4, scoped, tag = 'scoped memory for tpu_custom_call.1']
    %9 = vsyncpa [#allocation5], 0
    %10 = vsyncpa [#allocation7], 0
    // Predicated region
    $region2: #{tpu_custom_call.1} parent=1 // pred_check
      _
    $region3: #{tpu_custom_call.1} parent=1 // pred_check_branch
      %12 = sbr.rel (0) target = $region5
    $region4: #{tpu_custom_call.1} parent=1 // pred_region
      %14 = vsyncadd [#allocation5], 0
      %s16 = sshll.u32 %s0, 4
      %s17 = int_to_ptr.hbm [resolvable:$true] %s16
      %s18 = sshll.u32 [#allocation4], 4
      %s19 = int_to_ptr.vmem [resolvable:$true] %s18
      %21 = dma.hbm_to_vmem [thread:$0]  %s17, 256, %s19, [#allocation5]
    $region5: #{tpu_custom_call.1} parent=1 // pred_fallthru
      _
    // Predicated region
    $region6: #{tpu_custom_call.1} parent=1 // pred_check
      _
    $region7: #{tpu_custom_call.1} parent=1 // pred_check_branch
      %23 = sbr.rel (0) target = $region9
    $region8: #{tpu_custom_call.1} parent=1 // pred_region
      %25 = vsyncadd [#allocation7], 0
      %s27 = sshll.u32 %s1, 4
      %s28 = int_to_ptr.hbm [resolvable:$true] %s27
      %s29 = sshll.u32 [#allocation6], 4
      %s30 = int_to_ptr.vmem [resolvable:$true] %s29
      %32 = dma.hbm_to_vmem [thread:$0]  %s28, 128, %s30, [#allocation7]
    $region9: #{tpu_custom_call.1} parent=1 // pred_fallthru
      _
    // Predicated region
    $region10: #{tpu_custom_call.1} parent=1 // pred_check
      _
    $region11: #{tpu_custom_call.1} parent=1 // pred_check_branch
      %34 = sbr.rel (0) target = $region13
    $region12: #{tpu_custom_call.1} parent=1 // pred_region
      _
    $region13: #{tpu_custom_call.1} parent=1 // pred_fallthru
      _
    // Predicated region
    $region14: #{tpu_custom_call.1} parent=1 // pred_check
      _
    $region15: #{tpu_custom_call.1} parent=1 // pred_check_branch
      %36 = sbr.rel (0) target = $region17
    $region16: #{tpu_custom_call.1} parent=1 // pred_region
      %38 = dma.done [#allocation5], 256
    $region17: #{tpu_custom_call.1} parent=1 // pred_fallthru
      _
    // Predicated region
    $region18: #{tpu_custom_call.1} parent=1 // pred_check
      _
    $region19: #{tpu_custom_call.1} parent=1 // pred_check_branch
      %40 = sbr.rel (0) target = $region21
    $region20: #{tpu_custom_call.1} parent=1 // pred_region
      %42 = dma.done [#allocation7], 128
    $region21: #{tpu_custom_call.1} parent=1 // pred_fallthru
      _
    %p43 = scmp.eq.s32.totalorder 0, 0
    // Predicated region
    $region22: #{tpu_custom_call.1} parent=1 // pred_check
      %p44 = pneg %p43
    $region23: #{tpu_custom_call.1} parent=1 // pred_check_branch
      %46 = sbr.rel (%p44) target = $region25
    $region24: #{tpu_custom_call.1} parent=1 // pred_region
      %47 = vst [vmem:[#allocation2] sm:$0x3] 0.0
    $region25: #{tpu_custom_call.1} parent=1 // pred_fallthru
      _
    %v48 = vld [vmem:[#allocation2] sm:$0x3]
    %v49 = vld [vmem:[#allocation4] sm:$0x3]
    %s50 = smul.u32 0, 1024
    %s51 = sshra.s32 %s50, 7
    %s52 = sand.u32 %s50, 127
    %s53 = scalar_lea.vmem [#allocation6], %s51
    %v54 = vld [vmem:[%s53] sm:$0x1]
    %v56 = vperm.slane %v54, 0
    %v58 = vmul.f32 %v49, %v56
    %v59 = vadd.f32 %v48, %v58
    %v60 = vld [vmem:[#allocation4 + $0x2] sm:$0x3]
    %s61 = sadd.s32 %s50, 128
    %s62 = sshra.s32 %s61, 7
    %s63 = sand.u32 %s61, 127
    %s64 = scalar_lea.vmem [#allocation6], %s62
    %v65 = vld [vmem:[%s64] sm:$0x1]
    %v67 = vperm.slane %v65, 0
    %v69 = vmul.f32 %v60, %v67
    %v70 = vadd.f32 %v59, %v69
    %v71 = vld [vmem:[#allocation4 + $0x4] sm:$0x3]
    %s72 = sadd.s32 %s50, 256
    %s73 = sshra.s32 %s72, 7
    %s74 = sand.u32 %s72, 127
    %s75 = scalar_lea.vmem [#allocation6], %s73
    %v76 = vld [vmem:[%s75] sm:$0x1]
    %v78 = vperm.slane %v76, 0
    %v80 = vmul.f32 %v71, %v78
    %v81 = vadd.f32 %v70, %v80
    %v82 = vld [vmem:[#allocation4 + $0x6] sm:$0x3]
    %s83 = sadd.s32 %s50, 384
    %s84 = sshra.s32 %s83, 7
    %s85 = sand.u32 %s83, 127
    %s86 = scalar_lea.vmem [#allocation6], %s84
    %v87 = vld [vmem:[%s86] sm:$0x1]
    %v89 = vperm.slane %v87, 0
    %v91 = vmul.f32 %v82, %v89
    %v92 = vadd.f32 %v81, %v91
    %v93 = vld [vmem:[#allocation4 + $0x8] sm:$0x3]
    %s94 = sadd.s32 %s50, 512
    %s95 = sshra.s32 %s94, 7
    %s96 = sand.u32 %s94, 127
    %s97 = scalar_lea.vmem [#allocation6], %s95
    %v98 = vld [vmem:[%s97] sm:$0x1]
    %v100 = vperm.slane %v98, 0
    %v102 = vmul.f32 %v93, %v100
    %v103 = vadd.f32 %v92, %v102
    %v104 = vld [vmem:[#allocation4 + $0xa] sm:$0x3]
    %s105 = sadd.s32 %s50, 640
    %s106 = sshra.s32 %s105, 7
    %s107 = sand.u32 %s105, 127
    %s108 = scalar_lea.vmem [#allocation6], %s106
    %v109 = vld [vmem:[%s108] sm:$0x1]
    %v111 = vperm.slane %v109, 0
    %v113 = vmul.f32 %v104, %v111
    %v114 = vadd.f32 %v103, %v113
    %v115 = vld [vmem:[#allocation4 + $0xc] sm:$0x3]
    %s116 = sadd.s32 %s50, 768
    %s117 = sshra.s32 %s116, 7
    %s118 = sand.u32 %s116, 127
    %s119 = scalar_lea.vmem [#allocation6], %s117
    %v120 = vld [vmem:[%s119] sm:$0x1]
    %v122 = vperm.slane %v120, 0
    %v124 = vmul.f32 %v115, %v122
    %v125 = vadd.f32 %v114, %v124
    %v126 = vld [vmem:[#allocation4 + $0xe] sm:$0x3]
    %s127 = sadd.s32 %s50, 896
    %s128 = sshra.s32 %s127, 7
    %s129 = sand.u32 %s127, 127
    %s130 = scalar_lea.vmem [#allocation6], %s128
    %v131 = vld [vmem:[%s130] sm:$0x1]
    %v133 = vperm.slane %v131, 0
    %v135 = vmul.f32 %v126, %v133
    %v136 = vadd.f32 %v125, %v135
    %137 = vst [vmem:[#allocation2] sm:$0x3] %v136
    // Predicated region
    $region26: #{tpu_custom_call.1} parent=1 // pred_check
      %p138 = pneg %p43
    $region27: #{tpu_custom_call.1} parent=1 // pred_check_branch
      %140 = sbr.rel (%p138) target = $region29
    $region28: #{tpu_custom_call.1} parent=1 // pred_region
      %v141 = vld [vmem:[#allocation2] sm:$0x3]
      %vm142 = vcmask 1041408
      %v143 = vsel %vm142, %v141, 0.0
      %144 = vadd.xlane.f32.xlu0 %v143
      %v145 = vpop.xlane.xlu0 %144
      %s146 = sld [smem:[#allocation3]]
      %v147 = vstv %s146
      %v148 = vadd.f32 %v145, %v147
      %v149 = vxor.u32 %v148, 2147483648
      %v150 = vmul.f32 %v149, 1.442695
      %v151 = vpow.pop %v150
      %v152 = vadd.f32 %v151, 1.0
      %v153 = vrcp.pop %v152
      %v154 = vmul.f32 %v152, %v153
      %v155 = vsub.f32 1.0, %v154
      %v156 = vmul.f32 %v153, %v155
      %v157 = vadd.f32 %v153, %v156
      %vm158 = vweird.f32 %v152
      %vm159 = vweird.f32 %v153
      %vm160 = vmor %vm158, %vm159
      %v161 = vsel %vm160, %v153, %v157
      %v162 = vand.u32 2147483647, %v152
      %vm163 = vcmp.eq.f32.partialorder %v162, 8.507059e+37
      %v164 = vand.u32 %v152, 2147483648
      %v165 = vor.u32 1.1754944e-38, %v164
      %v166 = vsel %vm163, %v165, %v161
      %v167 = vmul.f32 1.0, %v166
      %vm168 = vcmask 1024
      %169 = vst.msk [vmem:[%s3] sm:$0x3] %vm168, %v167
    $region29: #{tpu_custom_call.1} parent=1 // pred_fallthru
      _
    // Predicated region
    $region30: #{tpu_custom_call.1} parent=1 // pred_check
      _
    $region31: #{tpu_custom_call.1} parent=1 // pred_check_branch
      %171 = sbr.rel (0) target = $region33
    $region32: #{tpu_custom_call.1} parent=1 // pred_region
      _
    $region33: #{tpu_custom_call.1} parent=1 // pred_fallthru
      _
    // Predicated region
    $region34: #{tpu_custom_call.1} parent=1 // pred_check
      _
    $region35: #{tpu_custom_call.1} parent=1 // pred_check_branch
      %173 = sbr.rel (0) target = $region37
    $region36: #{tpu_custom_call.1} parent=1 // pred_region
      _
    $region37: #{tpu_custom_call.1} parent=1 // pred_fallthru
      _
    %174 = vsyncpa [#allocation5], 1
    %175 = vsyncpa [#allocation7], 1

</llo_original>
